<compile_context>
chip_gen: v5e
topology: v5e:2x2
jax: 0.10.0
libtpu: 0.0.40
codegen_flags: <defaults>
</compile_context>

<pallas_src>
import functools

import jax
import jax.numpy as jnp
from jax.experimental import pallas as pl
from jax.experimental.pallas import tpu as pltpu

_LANES = 128
_MIB = 1024 * 1024


def _round_up(x: int, m: int) -> int:
    return -(-x // m) * m


def _sublane_multiple(itemsize: int) -> int:
    # Packed-dtype minimum second-minor tile: 8 rows (f32), 16 (bf16), 32 (int8).
    return max(8, 32 // int(itemsize))


def _dropsample_kernel(scale, keep_ref, x_ref, o_ref):
    # keep_ref : (B,) int32 in SMEM (scalar prefetch), 1 = keep, 0 = drop.
    # x_ref/o_ref : (m_tile, N) tile of one flattened sample.
    b = pl.program_id(0)
    # f32 per-sample scale; promote -> mul -> demote so 1/(1-prob) is not
    # rounded to bf16/int8 before use.
    s = keep_ref[b].astype(jnp.float32) * jnp.float32(scale)
    o_ref[...] = (x_ref[...].astype(jnp.float32) * s).astype(o_ref.dtype)


def _choose_m_tile(M, N, itemsize, B, target_block_bytes):
    """Pick the row tile for a (B, M, N) view.  Returns (m_tile, grid_m)."""
    sub = _sublane_multiple(itemsize)
    row_bytes = _round_up(N, _LANES) * itemsize
    max_rows = max(sub, (target_block_bytes // row_bytes) // sub * sub)
    m_tile = M if M <= max_rows else max_rows
    # v7x has 2 TensorCores per chip: keep the parallel grid >= 2 steps so a
    # single-sample call still uses both cores.
    if B * pl.cdiv(M, m_tile) < 2 and M > sub:
        m_tile = max(sub, _round_up(pl.cdiv(M, 2), sub))
    return int(m_tile), int(pl.cdiv(M, m_tile))


def _dropsample_3d(keep_i32, x3, scale, m_tile, grid_m):
    B, M, N = x3.shape
    itemsize = x3.dtype.itemsize
    block_bytes = m_tile * _round_up(N, _LANES) * itemsize

    def in_map(b, r, keep_ref):
        # Dropped samples produce zeros regardless of the data read, so pin
        # their input block index to 0: the repeated index lets Pallas elide
        # the HBM->VMEM DMA for most of a dropped sample.
        return (b, jnp.where(keep_ref[b] == 0, 0, r), 0)

    def out_map(b, r, keep_ref):
        return (b, r, 0)

    return pl.pallas_call(
        functools.partial(_dropsample_kernel, float(scale)),
        out_shape=jax.ShapeDtypeStruct((B, M, N), x3.dtype),
        grid_spec=pltpu.PrefetchScalarGridSpec(
            num_scalar_prefetch=1,                       # keep mask -> SMEM
            grid=(B, grid_m),
            in_specs=[pl.BlockSpec((None, m_tile, N), in_map)],
            out_specs=pl.BlockSpec((None, m_tile, N), out_map),
        ),
        compiler_params=pltpu.CompilerParams(
            dimension_semantics=("parallel", "parallel"),
            # Double-buffered in + out + headroom; capped under v7x's 64 MiB
            # physical VMEM, raised above v5e's 16 MiB scoped default.
            vmem_limit_bytes=int(min(56 * _MIB,
                                     max(32 * _MIB, 4 * block_bytes + 8 * _MIB))),
        ),
        cost_estimate=pl.CostEstimate(
            flops=int(B * M * N),
            transcendentals=0,
            bytes_accessed=int(2 * B * M * N * itemsize),
        ),
    )(keep_i32, x3)


def dropsample(x, prob: float, seed: int, training: bool = True,
               target_block_bytes: int = 4 * _MIB):
    """Pallas Dropsample forward.  x: (B, ...).  Returns same shape/dtype."""
    if prob == 0.0 or not training:
        return x                                         # identity, like the module

    B = int(x.shape[0])
    L = 1
    for d in x.shape[1:]:
        L *= int(d)
    itemsize = jnp.dtype(x.dtype).itemsize

    # Per-sample keep decision, hoisted out of the kernel (int32 mask -> SMEM).
    if prob >= 1.0:
        keep = jnp.zeros((B,), jnp.int32)                # drop everything; avoid 1/0
        scale = 0.0
    else:
        u = jax.random.uniform(jax.random.PRNGKey(seed), (B,), dtype=jnp.float32)
        keep = (u > prob).astype(jnp.int32)
        scale = 1.0 / (1.0 - prob)

    if L % _LANES == 0:
        # Fast path (common case): zero-copy lane-dense view (B, L//128, 128).
        rows = L // _LANES
        m_tile, grid_m = _choose_m_tile(rows, _LANES, itemsize, B, target_block_bytes)
        out = _dropsample_3d(keep, x.reshape(B, rows, _LANES), scale, m_tile, grid_m)
        return out.reshape(x.shape)

    # Unaligned C*H*W: stay zero-copy by using the natural trailing dims as the
    # lane axis (a block whose last dim equals the full array dim is always
    # legal); the <128-element tail just becomes a masked store.
    if x.ndim >= 3:
        M = int(x.shape[1])
        N = L // M
    else:
        M, N = 1, L
    sub = _sublane_multiple(itemsize)
    row_bytes = _round_up(N, _LANES) * itemsize
    if min(M, sub) * row_bytes <= 2 * target_block_bytes:
        m_tile, grid_m = _choose_m_tile(M, N, itemsize, B, target_block_bytes)
        out = _dropsample_3d(keep, x.reshape(B, M, N), scale, m_tile, grid_m)
        return out.reshape(x.shape)

    # TODO(synk): pathological shapes (huge, non-128-divisible trailing block)
    # still use pad-to-next-128 + slice (two extra HBM passes).
    rows = _round_up(L, _LANES) // _LANES
    m_tile, grid_m = _choose_m_tile(rows, _LANES, itemsize, B, target_block_bytes)
    x_pad = jnp.pad(x.reshape(B, L), ((0, 0), (0, rows * _LANES - L)))
    out = _dropsample_3d(keep, x_pad.reshape(B, rows, _LANES), scale, m_tile, grid_m)
    return out.reshape(B, rows * _LANES)[:, :L].reshape(x.shape)


if __name__ == "__main__":
    key = jax.random.PRNGKey(0)
    B, C, H, W = 2, 4, 16, 16
    x = jax.random.normal(key, (B, C, H, W), dtype=jnp.float32)

    # Training path, prob > 0 (128-aligned, zero-copy lane-dense path).
    y = jax.block_until_ready(dropsample(x, prob=0.25, seed=42, training=True))
    assert y.shape == x.shape and y.dtype == x.dtype
    scale = 1.0 / (1.0 - 0.25)
    for b in range(B):
        yb, xb = y[b], x[b]
        dropped = bool(jnp.all(yb == 0.0))
        kept = bool(jnp.allclose(yb, xb * scale, rtol=1e-5, atol=1e-5))
        assert dropped or kept, f"batch {b}: not a valid drop-sample output"

    # Unaligned path: C*H*W not a multiple of 128 (zero-copy masked-lane path).
    x2 = jax.random.normal(jax.random.PRNGKey(1), (2, 3, 14, 14), dtype=jnp.float32)
    y2 = jax.block_until_ready(dropsample(x2, prob=0.5, seed=7, training=True))
    s2 = 1.0 / (1.0 - 0.5)
    for b in range(x2.shape[0]):
        yb, xb = y2[b], x2[b]
        assert bool(jnp.all(yb == 0.0)) or bool(
            jnp.allclose(yb, xb * s2, rtol=1e-5, atol=1e-5)
        ), f"batch {b}: not a valid drop-sample output (unaligned path)"

    # bf16 path (dtype-aware sublane handling; f32 scale applied before demote).
    xb16 = jax.random.normal(jax.random.PRNGKey(2), (2, 4, 16, 16), dtype=jnp.bfloat16)
    yb16 = jax.block_until_ready(dropsample(xb16, prob=0.25, seed=11, training=True))
    for b in range(2):
        yb = yb16[b].astype(jnp.float32)
        ref = xb16[b].astype(jnp.float32) * scale
        assert bool(jnp.all(yb == 0.0)) or bool(
            jnp.allclose(yb, ref, rtol=1e-2, atol=1e-2)
        ), f"batch {b}: bf16 drop-sample mismatch"

    # prob == 1.0 guard: everything dropped, no NaNs.
    y1 = jax.block_until_ready(dropsample(x, prob=1.0, seed=3, training=True))
    assert bool(jnp.all(y1 == 0.0))

    # Eval / prob==0 paths are the identity.
    y_eval = jax.block_until_ready(dropsample(x, prob=0.25, seed=42, training=False))
    assert bool(jnp.array_equal(y_eval, x))
    y_p0 = jax.block_until_ready(dropsample(x, prob=0.0, seed=42, training=True))
    assert bool(jnp.array_equal(y_p0, x))

    print("KERNEL_OK")
</pallas_src>

<mosaic_0001>
module attributes {stable_mosaic.version = 11 : i64} {
  func.func @_dropsample_kernel(%arg0: i32, %arg1: i32, %arg2: memref<2xi32, #tpu.memory_space<smem>>, %arg3: memref<1x8x128xf32, #tpu.memory_space<vmem>>, %arg4: memref<1x8x128xf32, #tpu.memory_space<vmem>>) attributes {dimension_semantics = [#tpu.dimension_semantics<parallel>, #tpu.dimension_semantics<parallel>], iteration_bounds = array<i64: 2, 1>, scalar_prefetch = 1 : i64, scratch_operands = 0 : i64, tpu.core_type = #tpu.core_type<tc>, window_params = [{transform_indices = @transform_0, window_bounds = array<i64: 1, 8, 128>}, {transform_indices = @transform_1, window_bounds = array<i64: 1, 8, 128>}]} {
    %0 = arith.index_cast %arg0 : i32 to index
    %1 = memref.load %arg2[%0] : memref<2xi32, #tpu.memory_space<smem>>
    %2 = arith.sitofp %1 : i32 to f32
    %cst = arith.constant 1.33333337 : f32
    %3 = arith.mulf %2, %cst : f32
    %c0 = arith.constant 0 : index
    %c0_0 = arith.constant 0 : index
    %c0_1 = arith.constant 0 : index
    %4 = vector.load %arg3[%c0, %c0_0, %c0_1] : memref<1x8x128xf32, #tpu.memory_space<vmem>>, vector<1x8x128xf32>
    %5 = vector.shape_cast %4 : vector<1x8x128xf32> to vector<8x128xf32>
    %6 = vector.broadcast %3 : f32 to vector<8x128xf32>
    %7 = arith.mulf %5, %6 : vector<8x128xf32>
    %c0_2 = arith.constant 0 : index
    %c0_3 = arith.constant 0 : index
    %c0_4 = arith.constant 0 : index
    %8 = vector.load %arg4[%c0_2, %c0_3, %c0_4] : memref<1x8x128xf32, #tpu.memory_space<vmem>>, vector<1x8x128xf32>
    %9 = vector.shape_cast %8 : vector<1x8x128xf32> to vector<8x128xf32>
    %10 = vector.shape_cast %7 : vector<8x128xf32> to vector<1x8x128xf32>
    tpu.vector_store %arg4[%c0_2, %c0_3, %c0_4], %10 {strides = array<i32>} : memref<1x8x128xf32, #tpu.memory_space<vmem>>, vector<1x8x128xf32>,
    return
  }
  func.func @transform_0(%arg0: i32, %arg1: i32, %arg2: memref<2xi32, #tpu.memory_space<smem>>) -> (i32, i32, i32) {
    %0 = arith.index_cast %arg0 : i32 to index
    %1 = memref.load %arg2[%0] : memref<2xi32, #tpu.memory_space<smem>>
    %c0_i32 = arith.constant 0 : i32
    %2 = arith.cmpi eq, %1, %c0_i32 : i32
    %c0_i32_0 = arith.constant 0 : i32
    %3 = arith.select %2, %c0_i32_0, %arg1 : i32
    %c0_i32_1 = arith.constant 0 : i32
    %c0_i32_2 = arith.constant 0 : i32
    return %arg0, %3, %c0_i32_1 : i32, i32, i32
  }
  func.func @transform_1(%arg0: i32, %arg1: i32, %arg2: memref<2xi32, #tpu.memory_space<smem>>) -> (i32, i32, i32) {
    %c0_i32 = arith.constant 0 : i32
    %c0_i32_0 = arith.constant 0 : i32
    return %arg0, %arg1, %c0_i32 : i32, i32, i32
  }
}

</mosaic_0001>

<llo_original>
// kernel: tpu_custom_call.1
$region0: #{tpu_custom_call.1}
  #allocation0 [shape = 'u32[]', space=smem, size = 0x4, offset = 0x4, fixed_abs, tag = 'smem constant byte address 0x4 - core index']
  #allocation1 [shape = 'u32[72,128]{1,0:T(1,128)}', space=vmem, size = 0x9000, scoped, tag = 'internal scratch']
  #allocation2 [shape = 's32[1]{0}', space=sflag, size = 0x4, scoped, tag = 'scoped memory for tpu_custom_call.1']
  #allocation3 [shape = 'u8[512]{0}', space=smem, size = 0x200, scoped, tag = 'prefetched SMEM operand 0']
  %s0 = inlined_call_operand.hbm [shape: s32[2], index: 0, kind: input, shape index: {}]
  %s1 = inlined_call_operand.hbm [shape: f32[2,8,128], index: 1, kind: input, shape index: {}]
  %s2 = inlined_call_operand.hbm [shape: f32[2,8,128], index: 2, kind: output, shape index: {}]
  %s3 = sld [smem:[#allocation0]]
  $region41: #{tpu_custom_call.1} parent=0
    _
  %s5 = ssub.s32 1, %s3
  %s6 = scalar_select 0, %s5, %s3
  %s8 = sshll.u32 %s0, 4
  %s9 = int_to_ptr.hbm [resolvable:$true] %s8
  %11 = dma.hbm_to_smem %s9, 16, [#allocation3], [#allocation2]
  %13 = dma.done [#allocation2], 16
  %14 = sfence
  $region1: #{tpu_custom_call.1} parent=0
    #allocation4 [shape = 'u8[8192]{0}', space=vmem, size = 0x2000, scoped, tag = 'input window, operand 1']
    #allocation5 [shape = 's32[2]{0}', space=sflag, size = 0x8, scoped, tag = 'scoped memory for tpu_custom_call.1']
    #allocation6 [shape = 's32[2]{0}', space=sflag, size = 0x8, scoped, tag = 'scoped memory for tpu_custom_call.1']
    #allocation7 [shape = 'u8[8192]{0}', space=vmem, size = 0x2000, scoped, tag = 'output window, operand 0']
    %15 = vsyncpa [#allocation5], 0
    %s16 = scalar_lea.sflag [#allocation5], 1
    %17 = vsyncpa %s16, 0
    %18 = vsyncpa [#allocation6], 0
    %s19 = scalar_lea.sflag [#allocation6], 1
    %20 = vsyncpa %s19, 0
    loop: start=0, step=1, limit=4
    $region2: #{tpu_custom_call.1} parent=1 // loop_pre_header
      _
    $region3: #{tpu_custom_call.1} parent=1 // loop_header
      %s22 = sphi 0, %s26
      %p23 = scmp.ge.s32.totalorder %s22, 4
      %s29 = sphi 0, %s41
      %s30 = sphi 0, %s37
      %s31 = sphi 0, %s29
      %s32 = sphi 0, %s30
      %s33 = sphi 0, %s31
      %s34 = sphi 0, %s32
      %s52 = sphi 0, %s54
      %s55 = sphi 0, %s52
      %s56 = sphi 0, %s55
      %s72 = sphi 0, %s56
      %s80 = sphi 0, %s82
      %s83 = sphi 0, %s80
      %s84 = sphi 0, %s83
      %s100 = sphi 0, %s84
    $region4: #{tpu_custom_call.1} parent=1 // loop_header_branch
      %25 = sbr.rel (%p23) target = $region8
    $region5: #{tpu_custom_call.1} parent=1 // loop_body
      %s27 = ssub.s32 %s22, 1
      %s28 = ssub.s32 %s22, 2
      %s35 = sadd.s32 1, %s30
      %p36 = scmp.ge.s32.totalorder %s35, 1
      %s37 = scalar_select %p36, 0, %s35
      %s38 = sadd.s32 1, %s29
      %s39 = scalar_select %p36, %s38, %s29
      %p40 = scmp.ge.s32.totalorder %s39, 2
      %s41 = scalar_select %p40, 0, %s39
      %s42 = sld [smem:[#allocation3 + %s29]]
      %p43 = scmp.eq.s32.totalorder %s42, 0
      %s44 = scalar_select %p43, 0, %s30
      %s45 = sld [smem:[#allocation3 + %s41]]
      %p46 = scmp.eq.s32.totalorder %s45, 0
      %s47 = scalar_select %p46, 0, %s37
      %s48 = ssub.s32 %s29, %s41
      %s49 = ssub.s32 %s44, %s47
      %s50 = sor.u32 %s48, %s49
      %p51 = scmp.eq.s32.totalorder %s50, 0
      %s53 = sadd.s32 %s52, 1
      %s54 = scalar_select %p51, %s52, %s53
      %p57 = pneg %p51
      %p58 = scmp.eq.s32.totalorder %s22, 1
      %p59 = por %p57, %p58
      %p60 = scmp.ne.s32.totalorder %s52, %s55
      %p61 = scmp.eq.s32.totalorder %s22, 0
      %p62 = por %p60, %p61
      %p63 = scmp.ne.s32.totalorder %s52, %s55
      %p64 = scmp.eq.s32.totalorder %s27, 1
      %p65 = por %p63, %p64
      %p66 = scmp.ne.s32.totalorder %s55, %s56
      %p67 = scmp.eq.s32.totalorder %s27, 0
      %p68 = por %p66, %p67
      %p69 = scmp.ne.s32.totalorder %s55, %s56
      %p70 = scmp.eq.s32.totalorder %s28, 1
      %p71 = por %p69, %p70
      %p73 = scmp.ne.s32.totalorder %s56, %s72
      %p74 = scmp.eq.s32.totalorder %s28, 0
      %p75 = por %p73, %p74
      %s76 = ssub.s32 %s29, %s41
      %s77 = ssub.s32 %s30, %s37
      %s78 = sor.u32 %s76, %s77
      %p79 = scmp.eq.s32.totalorder %s78, 0
      %s81 = sadd.s32 %s80, 1
      %s82 = scalar_select %p79, %s80, %s81
      %p85 = pneg %p79
      %p86 = scmp.eq.s32.totalorder %s22, 1
      %p87 = por %p85, %p86
      %p88 = scmp.ne.s32.totalorder %s80, %s83
      %p89 = scmp.eq.s32.totalorder %s22, 0
      %p90 = por %p88, %p89
      %p91 = scmp.ne.s32.totalorder %s80, %s83
      %p92 = scmp.eq.s32.totalorder %s27, 1
      %p93 = por %p91, %p92
      %p94 = scmp.ne.s32.totalorder %s83, %s84
      %p95 = scmp.eq.s32.totalorder %s27, 0
      %p96 = por %p94, %p95
      %p97 = scmp.ne.s32.totalorder %s83, %s84
      %p98 = scmp.eq.s32.totalorder %s28, 1
      %p99 = por %p97, %p98
      %p101 = scmp.ne.s32.totalorder %s84, %s100
      %p102 = scmp.eq.s32.totalorder %s28, 0
      %p103 = por %p101, %p102
      %p104 = scmp.le.s32.totalorder 1, %s22
      %p105 = scmp.lt.s32.totalorder %s22, 3
      %p106 = pnand %p104, %p105
      %p107 = pneg %p106
      // Predicated region
      $region9: #{tpu_custom_call.1} parent=5 // pred_check
        _
      $region10: #{tpu_custom_call.1} parent=5 // pred_check_branch
        %109 = sbr.rel (%p106) target = $region12
      $region11: #{tpu_custom_call.1} parent=5 // pred_region
        %s110 = ssub.s32 %s22, 1
      $region12: #{tpu_custom_call.1} parent=5 // pred_fallthru
        _
      %p111 = scmp.lt.s32.totalorder %s22, 2
      // Predicated region
      $region13: #{tpu_custom_call.1} parent=5 // pred_check
        %p112 = pneg %p111
      $region14: #{tpu_custom_call.1} parent=5 // pred_check_branch
        %114 = sbr.rel (%p112) target = $region16
      $region15: #{tpu_custom_call.1} parent=5 // pred_region
        // Predicated region
        $region17: #{tpu_custom_call.1} parent=15 // pred_check
          %p115 = pneg %p62
        $region18: #{tpu_custom_call.1} parent=15 // pred_check_branch
          %117 = sbr.rel (%p115) target = $region20
        $region19: #{tpu_custom_call.1} parent=15 // pred_region
          %s118 = sand.u32 %s52, 1
          %s119 = scalar_lea.sflag [#allocation5], %s118
          %s120 = sand.u32 %s52, 1
          %s121 = smul.addr %s120, 8
          %s122 = scalar_lea.vmem [#allocation4], %s121
          %s123 = sld [smem:[#allocation3 + %s29]]
          %p124 = scmp.eq.s32.totalorder %s123, 0
          %s125 = scalar_select %p124, 0, %s30
          %127 = vsyncadd %s119, 0
          %s128 = sadd.s32 %s125, %s29
          %s129 = smul.addr %s128, 8
          %s130 = scalar_lea.hbm %s1, %s129
          %s132 = sshll.u32 %s130, 4
          %s133 = int_to_ptr.hbm [resolvable:$true] %s132
          %s134 = sshll.u32 %s122, 4
          %s135 = int_to_ptr.vmem [resolvable:$true] %s134
          %137 = dma.hbm_to_vmem [thread:$0]  %s133, 128, %s135, %s119
        $region20: #{tpu_custom_call.1} parent=15 // pred_fallthru
          _
      $region16: #{tpu_custom_call.1} parent=5 // pred_fallthru
        _
      %p138 = scmp.le.s32.totalorder 1, %s22
      %p139 = scmp.lt.s32.totalorder %s22, 3
      %p140 = pnand %p138, %p139
      %p141 = pneg %p140
      // Predicated region
      $region21: #{tpu_custom_call.1} parent=5 // pred_check
        _
      $region22: #{tpu_custom_call.1} parent=5 // pred_check_branch
        %143 = sbr.rel (%p140) target = $region24
      $region23: #{tpu_custom_call.1} parent=5 // pred_region
        %s144 = ssub.s32 %s22, 1
        %s145 = sand.u32 %s55, 1
        %s146 = scalar_lea.sflag [#allocation5], %s145
        %s147 = sand.u32 %s55, 1
        %s148 = smul.addr %s147, 8
        %s149 = scalar_lea.vmem [#allocation4], %s148
        // Predicated region
        $region25: #{tpu_custom_call.1} parent=23 // pred_check
          %p150 = pneg %p68
        $region26: #{tpu_custom_call.1} parent=23 // pred_check_branch
          %152 = sbr.rel (%p150) target = $region28
        $region27: #{tpu_custom_call.1} parent=23 // pred_region
          %154 = dma.done %s146, 128
        $region28: #{tpu_custom_call.1} parent=23 // pred_fallthru
          _
        %s155 = sand.u32 %s55, 1
        %s156 = scalar_lea.sflag [#allocation5], %s155
        %s157 = sand.u32 %s55, 1
        %s158 = smul.addr %s157, 8
        %s159 = scalar_lea.vmem [#allocation4], %s158
        %p160 = pneg %p68
        %p161 = pneg %p65
        %p162 = pneg %p96
        %p163 = pneg %p93
        %s164 = sand.u32 %s83, 1
        %s165 = scalar_lea.sflag [#allocation6], %s164
        %s166 = sand.u32 %s83, 1
        %s167 = smul.addr %s166, 8
        %s168 = scalar_lea.vmem [#allocation7], %s167
        %s169 = sld [smem:[#allocation3 + %s31]]
        %p170 = scmp.eq.s32.totalorder %s169, 0
        %s171 = scalar_select %p170, 0, %s32
        %s172 = sld [smem:[#allocation3 + %s31]]
        %s173 = scvt.s32.f32 %s172
        %s174 = smul.f32 %s173, 1.3333334
        %v175 = vld [vmem:[%s149] sm:$0xff]
        %v176 = vstv %s174
        %v177 = vmul.f32 %v175, %v176
        %178 = vst [vmem:[%s168] sm:$0xff] %v177
        %s179 = sand.u32 %s83, 1
        %s180 = scalar_lea.sflag [#allocation6], %s179
        %s181 = sand.u32 %s83, 1
        %s182 = smul.addr %s181, 8
        %s183 = scalar_lea.vmem [#allocation7], %s182
        // Predicated region
        $region29: #{tpu_custom_call.1} parent=23 // pred_check
          %p184 = pneg %p93
        $region30: #{tpu_custom_call.1} parent=23 // pred_check_branch
          %186 = sbr.rel (%p184) target = $region32
        $region31: #{tpu_custom_call.1} parent=23 // pred_region
          %188 = vsyncadd %s180, 0
          %s189 = sadd.s32 %s32, %s31
          %s190 = smul.addr %s189, 8
          %s191 = scalar_lea.hbm %s2, %s190
          %s193 = sshll.u32 %s183, 4
          %s194 = int_to_ptr.vmem [resolvable:$true] %s193
          %s195 = sshll.u32 %s191, 4
          %s196 = int_to_ptr.hbm [resolvable:$true] %s195
          %198 = dma.vmem_to_hbm [thread:$0]  %s194, 128, %s196, %s180
        $region32: #{tpu_custom_call.1} parent=23 // pred_fallthru
          _
      $region24: #{tpu_custom_call.1} parent=5 // pred_fallthru
        _
      %p199 = scmp.le.s32.totalorder 2, %s22
      // Predicated region
      $region33: #{tpu_custom_call.1} parent=5 // pred_check
        %p200 = pneg %p199
      $region34: #{tpu_custom_call.1} parent=5 // pred_check_branch
        %202 = sbr.rel (%p200) target = $region36
      $region35: #{tpu_custom_call.1} parent=5 // pred_region
        %s203 = ssub.s32 %s22, 2
        // Predicated region
        $region37: #{tpu_custom_call.1} parent=35 // pred_check
          %p204 = pneg %p99
        $region38: #{tpu_custom_call.1} parent=35 // pred_check_branch
          %206 = sbr.rel (%p204) target = $region40
        $region39: #{tpu_custom_call.1} parent=35 // pred_region
          %s207 = sand.u32 %s84, 1
          %s208 = scalar_lea.sflag [#allocation6], %s207
          %s209 = sand.u32 %s84, 1
          %s210 = smul.addr %s209, 8
          %s211 = scalar_lea.vmem [#allocation7], %s210
          %213 = dma.done %s208, 128
        $region40: #{tpu_custom_call.1} parent=35 // pred_fallthru
          _
      $region36: #{tpu_custom_call.1} parent=5 // pred_fallthru
        _
    $region6: #{tpu_custom_call.1} parent=1 // loop_footer
      %s26 = sadd.s32 1, %s22
    $region7: #{tpu_custom_call.1} parent=1 // loop_footer_branch
      %21 = sbr.rel target = $region3
    $region8: #{tpu_custom_call.1} parent=1 // loop_exit
      _
    %214 = vsyncpa [#allocation5], 1
    %s215 = scalar_lea.sflag [#allocation5], 1
    %216 = vsyncpa %s215, 1
    %217 = vsyncpa [#allocation6], 1
    %s218 = scalar_lea.sflag [#allocation6], 1
    %219 = vsyncpa %s218, 1

</llo_original>
